<compile_context>
chip_gen: v6e
topology: v6e:2x2x1
jax: 0.10.0
libtpu: 0.0.40
codegen_flags: <defaults>
</compile_context>

<pallas_src>
import jax
import jax.numpy as jnp
from jax.experimental import pallas as pl
from jax.experimental.pallas import tpu as pltpu

IN_FEATURES = 24
HIDDEN1 = 12
HIDDEN2 = 8
OUT_FEATURES = 2

# Packed-parameter layout (zero padded, f32):
#   rows  0:24, cols 0:12  -> w1 (24, 12)
#   row  24,    cols 0:12  -> b1
#   rows 32:44, cols 0:8   -> w2 (12, 8)
#   row  48,    cols 0:8   -> b2
#   rows 56:64, cols 0:2   -> w3 (8, 2)
#   row  72,    cols 0:2   -> b3
PACK_ROWS = 80
PACK_COLS = 16


def _round_up(n, m):
    return ((n + m - 1) // m) * m


def mlp_softmax_kernel(x_ref, p_ref, o_ref):
    x = x_ref[...]  # (TB, 24) f32

    # fc1 + ReLU (24 -> 12, padded to 16 lanes; padded cols are exactly zero, so the
    # padded activation lanes are relu(0) == 0 and stay harmless downstream).
    w1 = p_ref[0:24, :]          # (24, 16)
    b1 = p_ref[24:25, :]         # (1, 16)
    h1 = jnp.maximum(jnp.dot(x, w1, preferred_element_type=jnp.float32) + b1, 0.0)

    # fc2 + ReLU (12 -> 8, padded to 16 lanes; padded rows/cols of w2 are zero so they
    # only ever multiply the zero-padded activation lanes).
    w2 = p_ref[32:48, :]         # (16, 16)
    b2 = p_ref[48:49, :]         # (1, 16)
    h2 = jnp.maximum(jnp.dot(h1, w2, preferred_element_type=jnp.float32) + b2, 0.0)

    # final (8 -> 2)
    w3 = p_ref[56:72, :]         # (16, 16)
    b3 = p_ref[72:73, :]         # (1, 16)
    logits = jnp.dot(h2, w3, preferred_element_type=jnp.float32) + b3  # (TB, 16); cols 0:2 valid

    # 2-class softmax specialized as a sigmoid of the logit difference:
    #   p0 = 1 / (1 + exp(l1 - l0)), p1 = 1 - p0
    # (one EUP exp per row, no row max, no cross-lane sum).
    l0 = logits[:, 0:1]
    l1 = logits[:, 1:2]
    p0 = 1.0 / (1.0 + jnp.exp(l1 - l0))

    lane = jax.lax.broadcasted_iota(jnp.int32, (x.shape[0], OUT_FEATURES), 1)
    o_ref[...] = jnp.where(lane == 0, p0, 1.0 - p0).astype(o_ref.dtype)


def pack_params(params):
    """Pack all weights & biases into one zero-padded (80, 16) f32 block (single DMA)."""
    w1, b1, w2, b2, w3, b3 = params
    p = jnp.zeros((PACK_ROWS, PACK_COLS), jnp.float32)
    p = p.at[0:24, 0:12].set(w1)
    p = p.at[24, 0:12].set(b1.reshape(-1))
    p = p.at[32:44, 0:8].set(w2)
    p = p.at[48, 0:8].set(b2.reshape(-1))
    p = p.at[56:64, 0:2].set(w3)
    p = p.at[72, 0:2].set(b3.reshape(-1))
    return p


def net_forward_pallas(x, packed_params, *, block_rows=4096):
    """Batch-tiled Pallas forward. Weights stay VMEM-resident across grid steps."""
    B, F = x.shape
    assert F == IN_FEATURES

    tb = _round_up(min(block_rows, _round_up(B, 8)), 8)
    bp = _round_up(B, tb)
    if bp != B:
        x = jnp.pad(x, ((0, bp - B), (0, 0)))  # padded rows are independent; sliced off below

    grid = (bp // tb,)
    flops = 2 * bp * (24 * 12 + 12 * 8 + 8 * 2)
    bytes_accessed = bp * (IN_FEATURES + OUT_FEATURES) * 4 + PACK_ROWS * PACK_COLS * 4

    out = pl.pallas_call(
        mlp_softmax_kernel,
        out_shape=jax.ShapeDtypeStruct((bp, OUT_FEATURES), jnp.float32),
        grid=grid,
        in_specs=[
            pl.BlockSpec((tb, IN_FEATURES), lambda i: (i, 0)),       # x: streamed per tile
            pl.BlockSpec((PACK_ROWS, PACK_COLS), lambda i: (0, 0)),  # params: constant -> resident
        ],
        out_specs=pl.BlockSpec((tb, OUT_FEATURES), lambda i: (i, 0)),
        compiler_params=pltpu.CompilerParams(
            dimension_semantics=("parallel",),
            vmem_limit_bytes=48 * 1024 * 1024,   # headroom; still below v7x physical VMEM
        ),
        cost_estimate=pl.CostEstimate(
            flops=flops, transcendentals=bp, bytes_accessed=bytes_accessed),
    )(x, packed_params)

    return out[:B] if bp != B else out


def mlp_softmax_reference(x, params):
    """Pure-jnp forward; also the small-batch path (let XLA fuse the tiny MLP)."""
    w1, b1, w2, b2, w3, b3 = params
    h1 = jnp.maximum(x @ w1 + b1, 0.0)
    h2 = jnp.maximum(h1 @ w2 + b2, 0.0)
    logits = h2 @ w3 + b3
    return jax.nn.softmax(logits, axis=1)


def net_forward(x, params, packed_params=None, *, block_rows=4096, min_pallas_rows=256):
    # Below a few hundred rows a standalone kernel is pure dispatch/DMA overhead: use fused XLA.
    if x.shape[0] < min_pallas_rows:
        return mlp_softmax_reference(x, params)
    if packed_params is None:
        packed_params = pack_params(params)
    return net_forward_pallas(x, packed_params, block_rows=block_rows)


def init_params(key):
    """Deterministic synthetic init matching nn.Linear(24,12)/(12,8)/(8,2)."""
    ks = jax.random.split(key, 6)

    def linear(kw, kb, fan_in, fan_out):
        bound = 1.0 / jnp.sqrt(jnp.float32(fan_in))
        w = jax.random.uniform(kw, (fan_in, fan_out), jnp.float32, -bound, bound)
        b = jax.random.uniform(kb, (1, fan_out), jnp.float32, -bound, bound)
        return w, b

    w1, b1 = linear(ks[0], ks[1], 24, 12)
    w2, b2 = linear(ks[2], ks[3], 12, 8)
    w3, b3 = linear(ks[4], ks[5], 8, 2)
    return (w1, b1, w2, b2, w3, b3)


if __name__ == "__main__":
    key = jax.random.PRNGKey(0)
    k_x, k_p = jax.random.split(key)

    # Small, but enough rows to exercise the batch grid (tb=128 -> grid=(4,)) and the
    # non-divisible-batch pad/slice path (500 -> padded 512).
    batch = 500
    x = jax.random.normal(k_x, (batch, IN_FEATURES), jnp.float32)
    params = init_params(k_p)
    packed = pack_params(params)

    # Multi-tile path (forces the grid to have >1 step).
    out = net_forward(x, params, packed_params=packed, block_rows=128)
    out = jax.block_until_ready(out)

    # Default-tile path (single step, tb rounded to the padded batch).
    out_default = net_forward(x, params, packed_params=packed)
    out_default = jax.block_until_ready(out_default)

    ref = mlp_softmax_reference(x, params)
    assert out.shape == (batch, OUT_FEATURES)
    assert jnp.allclose(out, ref, atol=1e-5, rtol=1e-5), "mismatch vs reference (tiled)"
    assert jnp.allclose(out_default, ref, atol=1e-5, rtol=1e-5), "mismatch vs reference (default)"
    assert jnp.allclose(jnp.sum(out, axis=1), 1.0, atol=1e-5), "softmax rows must sum to 1"

    print("KERNEL_OK")
</pallas_src>

<mosaic_0001>
module attributes {stable_mosaic.version = 11 : i64} {
  func.func @mlp_softmax_kernel(%arg0: i32, %arg1: memref<128x24xf32, #tpu.memory_space<vmem>>, %arg2: memref<80x16xf32, #tpu.memory_space<vmem>>, %arg3: memref<128x2xf32, #tpu.memory_space<vmem>>) attributes {dimension_semantics = [#tpu.dimension_semantics<parallel>], iteration_bounds = array<i64: 4>, scalar_prefetch = 0 : i64, scratch_operands = 0 : i64, tpu.core_type = #tpu.core_type<tc>, window_params = [{transform_indices = @transform_0, window_bounds = array<i64: 128, 24>}, {pipeline_mode = #tpu.pipeline_mode<synchronous>, transform_indices = @transform_1, window_bounds = array<i64: 80, 16>}, {transform_indices = @transform_2, window_bounds = array<i64: 128, 2>}]} {
    %c0 = arith.constant 0 : index
    %c0_0 = arith.constant 0 : index
    %0 = vector.load %arg1[%c0, %c0_0] : memref<128x24xf32, #tpu.memory_space<vmem>>, vector<128x24xf32>
    %c0_1 = arith.constant 0 : index
    %c0_2 = arith.constant 0 : index
    %1 = vector.load %arg2[%c0_1, %c0_2] : memref<80x16xf32, #tpu.memory_space<vmem>>, vector<24x16xf32>
    %c24 = arith.constant 24 : index
    %c0_3 = arith.constant 0 : index
    %2 = vector.load %arg2[%c24, %c0_3] : memref<80x16xf32, #tpu.memory_space<vmem>>, vector<1x16xf32>
    %cst = arith.constant dense<0.000000e+00> : vector<128x16xf32>
    %3 = tpu.matmul %0, %1, %cst {dimension_numbers = #tpu.dot_dimension_numbers<[1], [0], [0], [1], [0, 0, 1, 1], [], []>} : vector<128x24xf32>, vector<24x16xf32>, vector<128x16xf32> -> vector<128x16xf32>
    %4 = vector.broadcast %2 : vector<1x16xf32> to vector<128x16xf32>
    %5 = arith.addf %3, %4 : vector<128x16xf32>
    %cst_4 = arith.constant 0.000000e+00 : f32
    %6 = vector.broadcast %cst_4 : f32 to vector<128x16xf32>
    %7 = arith.maximumf %5, %6 : vector<128x16xf32>
    %c32 = arith.constant 32 : index
    %c0_5 = arith.constant 0 : index
    %8 = vector.load %arg2[%c32, %c0_5] : memref<80x16xf32, #tpu.memory_space<vmem>>, vector<16x16xf32>
    %c48 = arith.constant 48 : index
    %c0_6 = arith.constant 0 : index
    %9 = vector.load %arg2[%c48, %c0_6] : memref<80x16xf32, #tpu.memory_space<vmem>>, vector<1x16xf32>
    %cst_7 = arith.constant dense<0.000000e+00> : vector<128x16xf32>
    %10 = tpu.matmul %7, %8, %cst_7 {dimension_numbers = #tpu.dot_dimension_numbers<[1], [0], [0], [1], [0, 0, 1, 1], [], []>} : vector<128x16xf32>, vector<16x16xf32>, vector<128x16xf32> -> vector<128x16xf32>
    %11 = vector.broadcast %9 : vector<1x16xf32> to vector<128x16xf32>
    %12 = arith.addf %10, %11 : vector<128x16xf32>
    %cst_8 = arith.constant 0.000000e+00 : f32
    %13 = vector.broadcast %cst_8 : f32 to vector<128x16xf32>
    %14 = arith.maximumf %12, %13 : vector<128x16xf32>
    %c56 = arith.constant 56 : index
    %c0_9 = arith.constant 0 : index
    %15 = vector.load %arg2[%c56, %c0_9] : memref<80x16xf32, #tpu.memory_space<vmem>>, vector<16x16xf32>
    %c72 = arith.constant 72 : index
    %c0_10 = arith.constant 0 : index
    %16 = vector.load %arg2[%c72, %c0_10] : memref<80x16xf32, #tpu.memory_space<vmem>>, vector<1x16xf32>
    %cst_11 = arith.constant dense<0.000000e+00> : vector<128x16xf32>
    %17 = tpu.matmul %14, %15, %cst_11 {dimension_numbers = #tpu.dot_dimension_numbers<[1], [0], [0], [1], [0, 0, 1, 1], [], []>} : vector<128x16xf32>, vector<16x16xf32>, vector<128x16xf32> -> vector<128x16xf32>
    %18 = vector.broadcast %16 : vector<1x16xf32> to vector<128x16xf32>
    %19 = arith.addf %17, %18 : vector<128x16xf32>
    %20 = vector.extract_strided_slice %19 {offsets = [0, 0], sizes = [128, 1], strides = [1, 1]} : vector<128x16xf32> to vector<128x1xf32>
    %21 = vector.extract_strided_slice %19 {offsets = [0, 1], sizes = [128, 1], strides = [1, 1]} : vector<128x16xf32> to vector<128x1xf32>
    %22 = arith.subf %21, %20 : vector<128x1xf32>
    %23 = math.exp %22 : vector<128x1xf32>
    %cst_12 = arith.constant 1.000000e+00 : f32
    %24 = vector.broadcast %cst_12 : f32 to vector<128x1xf32>
    %25 = arith.addf %24, %23 : vector<128x1xf32>
    %cst_13 = arith.constant 1.000000e+00 : f32
    %26 = vector.broadcast %cst_13 : f32 to vector<128x1xf32>
    %27 = arith.divf %26, %25 : vector<128x1xf32>
    %28 = tpu.iota {dimensions = array<i32: 1>} : vector<128x2xi32>
    %c0_i32 = arith.constant 0 : i32
    %29 = vector.broadcast %c0_i32 : i32 to vector<128x2xi32>
    %30 = arith.cmpi eq, %28, %29 : vector<128x2xi32>
    %cst_14 = arith.constant 1.000000e+00 : f32
    %31 = vector.broadcast %cst_14 : f32 to vector<128x1xf32>
    %32 = arith.subf %31, %27 : vector<128x1xf32>
    %33 = vector.shape_cast %27 : vector<128x1xf32> to vector<128x1xf32>
    %34 = vector.broadcast %33 : vector<128x1xf32> to vector<128x2xf32>
    %35 = vector.shape_cast %32 : vector<128x1xf32> to vector<128x1xf32>
    %36 = vector.broadcast %35 : vector<128x1xf32> to vector<128x2xf32>
    %37 = arith.select %30, %34, %36 : vector<128x2xi1>, vector<128x2xf32>
    %c0_15 = arith.constant 0 : index
    %c0_16 = arith.constant 0 : index
    %38 = vector.load %arg3[%c0_15, %c0_16] : memref<128x2xf32, #tpu.memory_space<vmem>>, vector<128x2xf32>
    tpu.vector_store %arg3[%c0_15, %c0_16], %37 {strides = array<i32>} : memref<128x2xf32, #tpu.memory_space<vmem>>, vector<128x2xf32>,
    return
  }
  func.func @transform_0(%arg0: i32) -> (i32, i32) {
    %c0_i32 = arith.constant 0 : i32
    %c0_i32_0 = arith.constant 0 : i32
    return %arg0, %c0_i32 : i32, i32
  }
  func.func @transform_1(%arg0: i32) -> (i32, i32) {
    %c0_i32 = arith.constant 0 : i32
    %c0_i32_0 = arith.constant 0 : i32
    %c0_i32_1 = arith.constant 0 : i32
    return %c0_i32, %c0_i32_0 : i32, i32
  }
  func.func @transform_2(%arg0: i32) -> (i32, i32) {
    %c0_i32 = arith.constant 0 : i32
    %c0_i32_0 = arith.constant 0 : i32
    return %arg0, %c0_i32 : i32, i32
  }
}

</mosaic_0001>

<llo_original>
// kernel: tpu_custom_call.1
$region0: #{tpu_custom_call.1}
  #allocation0 [shape = 'u32[]', space=smem, size = 0x4, offset = 0x4, fixed_abs, tag = 'smem constant byte address 0x4 - core index']
  #allocation1 [shape = 'u32[144,128]{1,0:T(1,128)}', space=vmem, size = 0x12000, scoped, tag = 'internal scratch']
  %s0 = inlined_call_operand.vmem [shape: f32[512,24], index: 0, kind: input, shape index: {}]
  %s1 = inlined_call_operand.vmem [shape: f32[80,16], index: 1, kind: input, shape index: {}]
  %s2 = inlined_call_operand.vmem [shape: f32[512,2], index: 2, kind: output, shape index: {}]
  %s3 = sld [smem:[#allocation0]]
  $region41: #{tpu_custom_call.1} parent=0
    _
  %s5 = ssub.s32 1, %s3
  %s6 = scalar_select 0, %s5, %s3
  loop: start=0, step=1, limit=6
  $region2: #{tpu_custom_call.1} parent=0 // loop_pre_header
    _
  $region3: #{tpu_custom_call.1} parent=0 // loop_header
    %s8 = sphi 0, %s12
    %p9 = scmp.ge.s32.totalorder %s8, 6
    %s18 = sphi 0, %s20
    %s21 = sphi 0, %s18
    %s22 = sphi 0, %s21
    %s38 = sphi 0, %s22
    %s42 = sphi 0, %s42
    %s44 = sphi 0, %s42
    %s45 = sphi 0, %s44
    %s59 = sphi 0, %s45
    %s65 = sphi 0, %s67
    %s68 = sphi 0, %s65
    %s69 = sphi 0, %s68
    %s85 = sphi 0, %s69
  $region4: #{tpu_custom_call.1} parent=0 // loop_header_branch
    %11 = sbr.rel (%p9) target = $region8
  $region5: #{tpu_custom_call.1} parent=0 // loop_body
    %s13 = ssub.s32 %s8, 1
    %s14 = ssub.s32 %s8, 2
    %s15 = sadd.s32 %s8, 1
    %s16 = ssub.s32 %s8, %s15
    %p17 = scmp.eq.s32.totalorder %s16, 0
    %s19 = sadd.s32 %s18, 1
    %s20 = scalar_select %p17, %s18, %s19
    %p23 = pneg %p17
    %p24 = scmp.eq.s32.totalorder %s8, 3
    %p25 = por %p23, %p24
    %p26 = scmp.ne.s32.totalorder %s18, %s21
    %p27 = scmp.eq.s32.totalorder %s8, 0
    %p28 = por %p26, %p27
    %p29 = scmp.ne.s32.totalorder %s18, %s21
    %p30 = scmp.eq.s32.totalorder %s13, 3
    %p31 = por %p29, %p30
    %p32 = scmp.ne.s32.totalorder %s21, %s22
    %p33 = scmp.eq.s32.totalorder %s13, 0
    %p34 = por %p32, %p33
    %p35 = scmp.ne.s32.totalorder %s21, %s22
    %p36 = scmp.eq.s32.totalorder %s14, 3
    %p37 = por %p35, %p36
    %p39 = scmp.ne.s32.totalorder %s22, %s38
    %p40 = scmp.eq.s32.totalorder %s14, 0
    %p41 = por %p39, %p40
    %s43 = sadd.s32 %s42, 1
    %p46 = scmp.eq.s32.totalorder %s8, 3
    %p47 = scmp.ne.s32.totalorder %s42, %s44
    %p48 = scmp.eq.s32.totalorder %s8, 0
    %p49 = por %p47, %p48
    %p50 = scmp.ne.s32.totalorder %s42, %s44
    %p51 = scmp.eq.s32.totalorder %s13, 3
    %p52 = por %p50, %p51
    %p53 = scmp.ne.s32.totalorder %s44, %s45
    %p54 = scmp.eq.s32.totalorder %s13, 0
    %p55 = por %p53, %p54
    %p56 = scmp.ne.s32.totalorder %s44, %s45
    %p57 = scmp.eq.s32.totalorder %s14, 3
    %p58 = por %p56, %p57
    %p60 = scmp.ne.s32.totalorder %s45, %s59
    %p61 = scmp.eq.s32.totalorder %s14, 0
    %p62 = por %p60, %p61
    %s63 = ssub.s32 %s8, %s15
    %p64 = scmp.eq.s32.totalorder %s63, 0
    %s66 = sadd.s32 %s65, 1
    %s67 = scalar_select %p64, %s65, %s66
    %p70 = pneg %p64
    %p71 = scmp.eq.s32.totalorder %s8, 3
    %p72 = por %p70, %p71
    %p73 = scmp.ne.s32.totalorder %s65, %s68
    %p74 = scmp.eq.s32.totalorder %s8, 0
    %p75 = por %p73, %p74
    %p76 = scmp.ne.s32.totalorder %s65, %s68
    %p77 = scmp.eq.s32.totalorder %s13, 3
    %p78 = por %p76, %p77
    %p79 = scmp.ne.s32.totalorder %s68, %s69
    %p80 = scmp.eq.s32.totalorder %s13, 0
    %p81 = por %p79, %p80
    %p82 = scmp.ne.s32.totalorder %s68, %s69
    %p83 = scmp.eq.s32.totalorder %s14, 3
    %p84 = por %p82, %p83
    %p86 = scmp.ne.s32.totalorder %s69, %s85
    %p87 = scmp.eq.s32.totalorder %s14, 0
    %p88 = por %p86, %p87
    %p89 = scmp.le.s32.totalorder 1, %s8
    %p90 = scmp.lt.s32.totalorder %s8, 5
    %p91 = pnand %p89, %p90
    %p92 = pneg %p91
    // Predicated region
    $region9: #{tpu_custom_call.1} parent=5 // pred_check
      _
    $region10: #{tpu_custom_call.1} parent=5 // pred_check_branch
      %94 = sbr.rel (%p91) target = $region12
    $region11: #{tpu_custom_call.1} parent=5 // pred_region
      %s95 = ssub.s32 %s8, 1
      // Predicated region
      $region13: #{tpu_custom_call.1} parent=11 // pred_check
        %p96 = pneg %p55
      $region14: #{tpu_custom_call.1} parent=11 // pred_check_branch
        %98 = sbr.rel (%p96) target = $region16
      $region15: #{tpu_custom_call.1} parent=11 // pred_region
        _
      $region16: #{tpu_custom_call.1} parent=11 // pred_fallthru
        _
    $region12: #{tpu_custom_call.1} parent=5 // pred_fallthru
      _
    %p99 = scmp.lt.s32.totalorder %s8, 4
    // Predicated region
    $region17: #{tpu_custom_call.1} parent=5 // pred_check
      %p100 = pneg %p99
    $region18: #{tpu_custom_call.1} parent=5 // pred_check_branch
      %102 = sbr.rel (%p100) target = $region20
    $region19: #{tpu_custom_call.1} parent=5 // pred_region
      // Predicated region
      $region21: #{tpu_custom_call.1} parent=19 // pred_check
        %p103 = pneg %p28
      $region22: #{tpu_custom_call.1} parent=19 // pred_check_branch
        %105 = sbr.rel (%p103) target = $region24
      $region23: #{tpu_custom_call.1} parent=19 // pred_region
        %s106 = smul.u32 16, %s8
        %p107 = scmp.lt.s32.totalorder %s106, 63
        %s108 = scalar_select %p107, %s106, 63
        %s109 = smul.addr %s108, 8
        %s110 = scalar_lea.vmem %s0, %s109
        %s111 = smul.u32 16, %s8
      $region24: #{tpu_custom_call.1} parent=19 // pred_fallthru
        _
    $region20: #{tpu_custom_call.1} parent=5 // pred_fallthru
      _
    %p112 = scmp.le.s32.totalorder 1, %s8
    %p113 = scmp.lt.s32.totalorder %s8, 5
    %p114 = pnand %p112, %p113
    %p115 = pneg %p114
    // Predicated region
    $region25: #{tpu_custom_call.1} parent=5 // pred_check
      _
    $region26: #{tpu_custom_call.1} parent=5 // pred_check_branch
      %117 = sbr.rel (%p114) target = $region28
    $region27: #{tpu_custom_call.1} parent=5 // pred_region
      %s118 = ssub.s32 %s8, 1
      %s119 = smul.u32 16, %s13
      %p120 = scmp.lt.s32.totalorder %s119, 63
      %s121 = scalar_select %p120, %s119, 63
      %s122 = smul.addr %s121, 8
      %s123 = scalar_lea.vmem %s0, %s122
      %p124 = pneg %p34
      %p125 = pneg %p31
      %p126 = pneg %p55
      %p127 = pneg %p52
      %p128 = pneg %p81
      %p129 = pneg %p78
      %s130 = smul.u32 16, %s13
      %p131 = scmp.lt.s32.totalorder %s130, 63
      %s132 = scalar_select %p131, %s130, 63
      %s133 = smul.addr %s132, 8
      %s134 = scalar_lea.vmem %s2, %s133
      %s135 = smul.u32 16, %s13
      %p136 = scmp.lt.s32.totalorder %s135, 63
      %s137 = scalar_select %p136, %s135, 63
      %s138 = smul.addr %s137, 8
      %s139 = scalar_lea.vmem %s0, %s138
      %s140 = smul.u32 16, %s13
      %s141 = smul.u32 16, %s13
      %p142 = scmp.lt.s32.totalorder %s141, 63
      %s143 = scalar_select %p142, %s141, 63
      %s144 = smul.addr %s143, 8
      %s145 = scalar_lea.vmem %s2, %s144
      %s146 = smul.u32 16, %s13
      %v147 = vld [vmem:[%s139] sm:$0xff]
      %v148 = vld [vmem:[%s139 + $0x8] sm:$0xff]
      %v149 = vld [vmem:[%s139 + $0x10] sm:$0xff]
      %v150 = vld [vmem:[%s139 + $0x18] sm:$0xff]
      %v151 = vld [vmem:[%s139 + $0x20] sm:$0xff]
      %v152 = vld [vmem:[%s139 + $0x28] sm:$0xff]
      %v153 = vld [vmem:[%s139 + $0x30] sm:$0xff]
      %v154 = vld [vmem:[%s139 + $0x38] sm:$0xff]
      %v155 = vld [vmem:[%s139 + $0x40] sm:$0xff]
      %v156 = vld [vmem:[%s139 + $0x48] sm:$0xff]
      %v157 = vld [vmem:[%s139 + $0x50] sm:$0xff]
      %v158 = vld [vmem:[%s139 + $0x58] sm:$0xff]
      %v159 = vld [vmem:[%s139 + $0x60] sm:$0xff]
      %v160 = vld [vmem:[%s139 + $0x68] sm:$0xff]
      %v161 = vld [vmem:[%s139 + $0x70] sm:$0xff]
      %v162 = vld [vmem:[%s139 + $0x78] sm:$0xff]
      %v163 = vld [vmem:[%s1] sm:$0xff]
      %v164 = vld [vmem:[%s1 + $0x8] sm:$0xff]
      %v165 = vld [vmem:[%s1 + $0x10] sm:$0xff]
      %v166 = vld [vmem:[%s1 + $0x18] sm:$0x1]
      %v167 = vlaneseq
      %v168 = vshrl.u32 %v167, 7
      %v169 = vsub.s32 0, %v168
      %v170 = vrot.slane %v166, %v169
      %vm171 = vcmask 195584
      %v173 = vsel %vm171, %v147, 0
      %v176 = vsel %vm171, %v148, 0
      %v179 = vsel %vm171, %v149, 0
      %v182 = vsel %vm171, %v150, 0
      %v185 = vsel %vm171, %v151, 0
      %v188 = vsel %vm171, %v152, 0
      %v191 = vsel %vm171, %v153, 0
      %v194 = vsel %vm171, %v154, 0
      %v197 = vsel %vm171, %v155, 0
      %v200 = vsel %vm171, %v156, 0
      %v203 = vsel %vm171, %v157, 0
      %v206 = vsel %vm171, %v158, 0
      %v209 = vsel %vm171, %v159, 0
      %v212 = vsel %vm171, %v160, 0
      %v215 = vsel %vm171, %v161, 0
      %v218 = vsel %vm171, %v162, 0
      %220 = vmatprep.subr.mxu0 0.0
      %221 = vmatpush1.msra.mxu0 0.0
      %222 = vmatprep.subr.mxu0 0.0
      %223 = vmatpush1.msra.mxu0 0.0
      %224 = vmatprep.subr.mxu0 0.0
      %225 = vmatpush1.msra.mxu0 0.0
      %226 = vmatprep.subr.mxu0 0.0
      %227 = vmatpush1.msra.mxu0 0.0
      %228 = vmatprep.subr.mxu0 0.0
      %229 = vmatpush1.msra.mxu0 0.0
      %230 = vmatprep.subr.mxu0 0.0
      %231 = vmatpush1.msra.mxu0 0.0
      %232 = vmatprep.subr.mxu0 0.0
      %233 = vmatpush1.msra.mxu0 0.0
      %234 = vmatprep.subr.mxu0 0.0
      %235 = vmatpush1.msra.mxu0 0.0
      %236 = vmatprep.subr.mxu0 0.0
      %237 = vmatpush1.msra.mxu0 0.0
      %238 = vmatprep.subr.mxu0 0.0
      %239 = vmatpush1.msra.mxu0 0.0
      %240 = vmatprep.subr.mxu0 0.0
      %241 = vmatpush1.msra.mxu0 0.0
      %242 = vmatprep.subr.mxu0 0.0
      %243 = vmatpush1.msra.mxu0 0.0
      %244 = vmatprep.subr.mxu0 0.0
      %245 = vmatpush1.msra.mxu0 0.0
      %246 = vmatprep.subr.mxu0 0.0
      %247 = vmatpush1.msra.mxu0 %v165
      %248 = vmatprep.subr.mxu0 0.0
      %249 = vmatpush1.msra.mxu0 %v164
      %250 = vmatprep.subr.mxu0 0.0
      %251 = vmatpush1.msra.mxu0 %v163
      %252 = vmatprep.subr.mxu0 0.0
      %253 = vmatpush2.msra.mxu0 0.0
      %254 = vmatprep.subr.mxu0 0.0
      %255 = vmatpush2.msra.mxu0 0.0
      %256 = vmatprep.subr.mxu0 0.0
      %257 = vmatpush2.msra.mxu0 0.0
      %258 = vmatprep.subr.mxu0 0.0
      %259 = vmatpush2.msra.mxu0 0.0
      %260 = vmatprep.subr.mxu0 0.0
      %261 = vmatpush2.msra.mxu0 0.0
      %262 = vmatprep.subr.mxu0 0.0
      %263 = vmatpush2.msra.mxu0 0.0
      %264 = vmatprep.subr.mxu0 0.0
      %265 = vmatpush2.msra.mxu0 0.0
      %266 = vmatprep.subr.mxu0 0.0
      %267 = vmatpush2.msra.mxu0 0.0
      %268 = vmatprep.subr.mxu0 0.0
      %269 = vmatpush2.msra.mxu0 0.0
      %270 = vmatprep.subr.mxu0 0.0
      %271 = vmatpush2.msra.mxu0 0.0
      %272 = vmatprep.subr.mxu0 0.0
      %273 = vmatpush2.msra.mxu0 0.0
      %274 = vmatprep.subr.mxu0 0.0
      %275 = vmatpush2.msra.mxu0 0.0
      %276 = vmatprep.subr.mxu0 0.0
      %277 = vmatpush2.msra.mxu0 0.0
      %278 = vmatprep.subr.mxu0 0.0
      %279 = vmatpush2.msra.mxu0 0.0
      %280 = vmatprep.subr.mxu0 0.0
      %281 = vmatpush2.msra.mxu0 0.0
      %282 = vmatprep.subr.mxu0 0.0
      %283 = vmatpush2.msra.mxu0 0.0
      %284 = vmatprep.mubr.f32.mxu0 0.0
      %285 = vmatmul.mubr.f32.gmra.mxu0 %v173
      %v286 = vpop.f32.mrf.mxu0
      %v287 = vadd.f32 %v170, %v286
      %v288 = vpop.f32.mrf.mxu0
      %289 = vmatprep.mubr.f32.mxu0 0.0
      %290 = vmatmul.mubr.f32.gmra.mxu0 %v176
      %v291 = vpop.f32.mrf.mxu0
      %v292 = vadd.f32 %v170, %v291
      %v293 = vpop.f32.mrf.mxu0
      %294 = vmatprep.mubr.f32.mxu0 0.0
      %295 = vmatmul.mubr.f32.gmra.mxu0 %v179
      %v296 = vpop.f32.mrf.mxu0
      %v297 = vadd.f32 %v170, %v296
      %v298 = vpop.f32.mrf.mxu0
      %299 = vmatprep.mubr.f32.mxu0 0.0
      %300 = vmatmul.mubr.f32.gmra.mxu0 %v182
      %v301 = vpop.f32.mrf.mxu0
      %v302 = vadd.f32 %v170, %v301
      %v303 = vpop.f32.mrf.mxu0
      %304 = vmatprep.mubr.f32.mxu0 0.0
      %305 = vmatmul.mubr.f32.gmra.mxu0 %v185
      %v306 = vpop.f32.mrf.mxu0
      %v307 = vadd.f32 %v170, %v306
      %v308 = vpop.f32.mrf.mxu0
      %309 = vmatprep.mubr.f32.mxu0 0.0
      %310 = vmatmul.mubr.f32.gmra.mxu0 %v188
      %v311 = vpop.f32.mrf.mxu0
      %v312 = vadd.f32 %v170, %v311
      %v313 = vpop.f32.mrf.mxu0
      %314 = vmatprep.mubr.f32.mxu0 0.0
      %315 = vmatmul.mubr.f32.gmra.mxu0 %v191
      %v316 = vpop.f32.mrf.mxu0
      %v317 = vadd.f32 %v170, %v316
      %v318 = vpop.f32.mrf.mxu0
      %319 = vmatprep.mubr.f32.mxu0 0.0
      %320 = vmatmul.mubr.f32.gmra.mxu0 %v194
      %v321 = vpop.f32.mrf.mxu0
      %v322 = vadd.f32 %v170, %v321
      %v323 = vpop.f32.mrf.mxu0
      %324 = vmatprep.mubr.f32.mxu0 0.0
      %325 = vmatmul.mubr.f32.gmra.mxu0 %v197
      %v326 = vpop.f32.mrf.mxu0
      %v327 = vadd.f32 %v170, %v326
      %v328 = vpop.f32.mrf.mxu0
      %329 = vmatprep.mubr.f32.mxu0 0.0
      %330 = vmatmul.mubr.f32.gmra.mxu0 %v200
      %v331 = vpop.f32.mrf.mxu0
      %v332 = vadd.f32 %v170, %v331
      %v333 = vpop.f32.mrf.mxu0
      %334 = vmatprep.mubr.f32.mxu0 0.0
      %335 = vmatmul.mubr.f32.gmra.mxu0 %v203
      %v336 = vpop.f32.mrf.mxu0
      %v337 = vadd.f32 %v170, %v336
      %v338 = vpop.f32.mrf.mxu0
      %339 = vmatprep.mubr.f32.mxu0 0.0
      %340 = vmatmul.mubr.f32.gmra.mxu0 %v206
      %v341 = vpop.f32.mrf.mxu0
      %v342 = vadd.f32 %v170, %v341
      %v343 = vpop.f32.mrf.mxu0
      %344 = vmatprep.mubr.f32.mxu0 0.0
      %345 = vmatmul.mubr.f32.gmra.mxu0 %v209
      %v346 = vpop.f32.mrf.mxu0
      %v347 = vadd.f32 %v170, %v346
      %v348 = vpop.f32.mrf.mxu0
      %349 = vmatprep.mubr.f32.mxu0 0.0
      %350 = vmatmul.mubr.f32.gmra.mxu0 %v212
      %v351 = vpop.f32.mrf.mxu0
      %v352 = vadd.f32 %v170, %v351
      %v353 = vpop.f32.mrf.mxu0
      %354 = vmatprep.mubr.f32.mxu0 0.0
      %355 = vmatmul.mubr.f32.gmra.mxu0 %v215
      %v356 = vpop.f32.mrf.mxu0
      %v357 = vadd.f32 %v170, %v356
      %v358 = vpop.f32.mrf.mxu0
      %359 = vmatprep.mubr.f32.mxu0 0.0
      %360 = vmatmul.mubr.f32.gmra.mxu0 %v218
      %v361 = vpop.f32.mrf.mxu0
      %v362 = vadd.f32 %v170, %v361
      %v363 = vpop.f32.mrf.mxu0
      %364 = vdwg.mxu0
      %v365 = vmax.f32 %v287, 0.0
      %v366 = vmax.f32 %v292, 0.0
      %v367 = vmax.f32 %v297, 0.0
      %v368 = vmax.f32 %v302, 0.0
      %v369 = vmax.f32 %v307, 0.0
      %v370 = vmax.f32 %v312, 0.0
      %v371 = vmax.f32 %v317, 0.0
      %v372 = vmax.f32 %v322, 0.0
      %v373 = vmax.f32 %v327, 0.0
      %v374 = vmax.f32 %v332, 0.0
      %v375 = vmax.f32 %v337, 0.0
      %v376 = vmax.f32 %v342, 0.0
      %v377 = vmax.f32 %v347, 0.0
      %v378 = vmax.f32 %v352, 0.0
      %v379 = vmax.f32 %v357, 0.0
      %v380 = vmax.f32 %v362, 0.0
      %v381 = vld [vmem:[%s1 + $0x20] sm:$0xff]
      %v382 = vld [vmem:[%s1 + $0x28] sm:$0xff]
      %v383 = vld [vmem:[%s1 + $0x30] sm:$0x1]
      %v384 = vlaneseq
      %v385 = vshrl.u32 %v384, 7
      %v386 = vsub.s32 0, %v385
      %v387 = vrot.slane %v383, %v386
      %vm388 = vcmask 130048
      %v390 = vsel %vm388, %v365, 0
      %v393 = vsel %vm388, %v366, 0
      %v396 = vsel %vm388, %v367, 0
      %v399 = vsel %vm388, %v368, 0
      %v402 = vsel %vm388, %v369, 0
      %v405 = vsel %vm388, %v370, 0
      %v408 = vsel %vm388, %v371, 0
      %v411 = vsel %vm388, %v372, 0
      %v414 = vsel %vm388, %v373, 0
      %v417 = vsel %vm388, %v374, 0
      %v420 = vsel %vm388, %v375, 0
      %v423 = vsel %vm388, %v376, 0
      %v426 = vsel %vm388, %v377, 0
      %v429 = vsel %vm388, %v378, 0
      %v432 = vsel %vm388, %v379, 0
      %v435 = vsel %vm388, %v380, 0
      %437 = vmatprep.subr.mxu0 0.0
      %438 = vmatpush1.msra.mxu0 0.0
      %439 = vmatprep.subr.mxu0 0.0
      %440 = vmatpush1.msra.mxu0 0.0
      %441 = vmatprep.subr.mxu0 0.0
      %442 = vmatpush1.msra.mxu0 0.0
      %443 = vmatprep.subr.mxu0 0.0
      %444 = vmatpush1.msra.mxu0 0.0
      %445 = vmatprep.subr.mxu0 0.0
      %446 = vmatpush1.msra.mxu0 0.0
      %447 = vmatprep.subr.mxu0 0.0
      %448 = vmatpush1.msra.mxu0 0.0
      %449 = vmatprep.subr.mxu0 0.0
      %450 = vmatpush1.msra.mxu0 0.0
      %451 = vmatprep.subr.mxu0 0.0
      %452 = vmatpush1.msra.mxu0 0.0
      %453 = vmatprep.subr.mxu0 0.0
      %454 = vmatpush1.msra.mxu0 0.0
      %455 = vmatprep.subr.mxu0 0.0
      %456 = vmatpush1.msra.mxu0 0.0
      %457 = vmatprep.subr.mxu0 0.0
      %458 = vmatpush1.msra.mxu0 0.0
      %459 = vmatprep.subr.mxu0 0.0
      %460 = vmatpush1.msra.mxu0 0.0
      %461 = vmatprep.subr.mxu0 0.0
      %462 = vmatpush1.msra.mxu0 0.0
      %463 = vmatprep.subr.mxu0 0.0
      %464 = vmatpush1.msra.mxu0 0.0
      %465 = vmatprep.subr.mxu0 0.0
      %466 = vmatpush1.msra.mxu0 %v382
      %467 = vmatprep.subr.mxu0 0.0
      %468 = vmatpush1.msra.mxu0 %v381
      %469 = vmatprep.subr.mxu0 0.0
      %470 = vmatpush2.msra.mxu0 0.0
      %471 = vmatprep.subr.mxu0 0.0
      %472 = vmatpush2.msra.mxu0 0.0
      %473 = vmatprep.subr.mxu0 0.0
      %474 = vmatpush2.msra.mxu0 0.0
      %475 = vmatprep.subr.mxu0 0.0
      %476 = vmatpush2.msra.mxu0 0.0
      %477 = vmatprep.subr.mxu0 0.0
      %478 = vmatpush2.msra.mxu0 0.0
      %479 = vmatprep.subr.mxu0 0.0
      %480 = vmatpush2.msra.mxu0 0.0
      %481 = vmatprep.subr.mxu0 0.0
      %482 = vmatpush2.msra.mxu0 0.0
      %483 = vmatprep.subr.mxu0 0.0
      %484 = vmatpush2.msra.mxu0 0.0
      %485 = vmatprep.subr.mxu0 0.0
      %486 = vmatpush2.msra.mxu0 0.0
      %487 = vmatprep.subr.mxu0 0.0
      %488 = vmatpush2.msra.mxu0 0.0
      %489 = vmatprep.subr.mxu0 0.0
      %490 = vmatpush2.msra.mxu0 0.0
      %491 = vmatprep.subr.mxu0 0.0
      %492 = vmatpush2.msra.mxu0 0.0
      %493 = vmatprep.subr.mxu0 0.0
      %494 = vmatpush2.msra.mxu0 0.0
      %495 = vmatprep.subr.mxu0 0.0
      %496 = vmatpush2.msra.mxu0 0.0
      %497 = vmatprep.subr.mxu0 0.0
      %498 = vmatpush2.msra.mxu0 0.0
      %499 = vmatprep.subr.mxu0 0.0
      %500 = vmatpush2.msra.mxu0 0.0
      %501 = vmatprep.mubr.f32.mxu0 0.0
      %502 = vmatmul.mubr.f32.gmra.mxu0 %v390
      %v503 = vpop.f32.mrf.mxu0
      %v504 = vadd.f32 %v387, %v503
      %v505 = vpop.f32.mrf.mxu0
      %506 = vmatprep.mubr.f32.mxu0 0.0
      %507 = vmatmul.mubr.f32.gmra.mxu0 %v393
      %v508 = vpop.f32.mrf.mxu0
      %v509 = vadd.f32 %v387, %v508
      %v510 = vpop.f32.mrf.mxu0
      %511 = vmatprep.mubr.f32.mxu0 0.0
      %512 = vmatmul.mubr.f32.gmra.mxu0 %v396
      %v513 = vpop.f32.mrf.mxu0
      %v514 = vadd.f32 %v387, %v513
      %v515 = vpop.f32.mrf.mxu0
      %516 = vmatprep.mubr.f32.mxu0 0.0
      %517 = vmatmul.mubr.f32.gmra.mxu0 %v399
      %v518 = vpop.f32.mrf.mxu0
      %v519 = vadd.f32 %v387, %v518
      %v520 = vpop.f32.mrf.mxu0
      %521 = vmatprep.mubr.f32.mxu0 0.0
      %522 = vmatmul.mubr.f32.gmra.mxu0 %v402
      %v523 = vpop.f32.mrf.mxu0
      %v524 = vadd.f32 %v387, %v523
      %v525 = vpop.f32.mrf.mxu0
      %526 = vmatprep.mubr.f32.mxu0 0.0
      %527 = vmatmul.mubr.f32.gmra.mxu0 %v405
      %v528 = vpop.f32.mrf.mxu0
      %v529 = vadd.f32 %v387, %v528
      %v530 = vpop.f32.mrf.mxu0
      %531 = vmatprep.mubr.f32.mxu0 0.0
      %532 = vmatmul.mubr.f32.gmra.mxu0 %v408
      %v533 = vpop.f32.mrf.mxu0
      %v534 = vadd.f32 %v387, %v533
      %v535 = vpop.f32.mrf.mxu0
      %536 = vmatprep.mubr.f32.mxu0 0.0
      %537 = vmatmul.mubr.f32.gmra.mxu0 %v411
      %v538 = vpop.f32.mrf.mxu0
      %v539 = vadd.f32 %v387, %v538
      %v540 = vpop.f32.mrf.mxu0
      %541 = vmatprep.mubr.f32.mxu0 0.0
      %542 = vmatmul.mubr.f32.gmra.mxu0 %v414
      %v543 = vpop.f32.mrf.mxu0
      %v544 = vadd.f32 %v387, %v543
      %v545 = vpop.f32.mrf.mxu0
      %546 = vmatprep.mubr.f32.mxu0 0.0
      %547 = vmatmul.mubr.f32.gmra.mxu0 %v417
      %v548 = vpop.f32.mrf.mxu0
      %v549 = vadd.f32 %v387, %v548
      %v550 = vpop.f32.mrf.mxu0
      %551 = vmatprep.mubr.f32.mxu0 0.0
      %552 = vmatmul.mubr.f32.gmra.mxu0 %v420
      %v553 = vpop.f32.mrf.mxu0
      %v554 = vadd.f32 %v387, %v553
      %v555 = vpop.f32.mrf.mxu0
      %556 = vmatprep.mubr.f32.mxu0 0.0
      %557 = vmatmul.mubr.f32.gmra.mxu0 %v423
      %v558 = vpop.f32.mrf.mxu0
      %v559 = vadd.f32 %v387, %v558
      %v560 = vpop.f32.mrf.mxu0
      %561 = vmatprep.mubr.f32.mxu0 0.0
      %562 = vmatmul.mubr.f32.gmra.mxu0 %v426
      %v563 = vpop.f32.mrf.mxu0
      %v564 = vadd.f32 %v387, %v563
      %v565 = vpop.f32.mrf.mxu0
      %566 = vmatprep.mubr.f32.mxu0 0.0
      %567 = vmatmul.mubr.f32.gmra.mxu0 %v429
      %v568 = vpop.f32.mrf.mxu0
      %v569 = vadd.f32 %v387, %v568
      %v570 = vpop.f32.mrf.mxu0
      %571 = vmatprep.mubr.f32.mxu0 0.0
      %572 = vmatmul.mubr.f32.gmra.mxu0 %v432
      %v573 = vpop.f32.mrf.mxu0
      %v574 = vadd.f32 %v387, %v573
      %v575 = vpop.f32.mrf.mxu0
      %576 = vmatprep.mubr.f32.mxu0 0.0
      %577 = vmatmul.mubr.f32.gmra.mxu0 %v435
      %v578 = vpop.f32.mrf.mxu0
      %v579 = vadd.f32 %v387, %v578
      %v580 = vpop.f32.mrf.mxu0
      %581 = vdwg.mxu0
      %v582 = vmax.f32 %v504, 0.0
      %v583 = vmax.f32 %v509, 0.0
      %v584 = vmax.f32 %v514, 0.0
      %v585 = vmax.f32 %v519, 0.0
      %v586 = vmax.f32 %v524, 0.0
      %v587 = vmax.f32 %v529, 0.0
      %v588 = vmax.f32 %v534, 0.0
      %v589 = vmax.f32 %v539, 0.0
      %v590 = vmax.f32 %v544, 0.0
      %v591 = vmax.f32 %v549, 0.0
      %v592 = vmax.f32 %v554, 0.0
      %v593 = vmax.f32 %v559, 0.0
      %v594 = vmax.f32 %v564, 0.0
      %v595 = vmax.f32 %v569, 0.0
      %v596 = vmax.f32 %v574, 0.0
      %v597 = vmax.f32 %v579, 0.0
      %v598 = vld [vmem:[%s1 + $0x38] sm:$0xff]
      %v599 = vld [vmem:[%s1 + $0x40] sm:$0xff]
      %v600 = vld [vmem:[%s1 + $0x48] sm:$0x1]
      %v601 = vlaneseq
      %v602 = vshrl.u32 %v601, 7
      %v603 = vsub.s32 0, %v602
      %v604 = vrot.slane %v600, %v603
      %v606 = vsel %vm388, %v582, 0
      %v609 = vsel %vm388, %v583, 0
      %v612 = vsel %vm388, %v584, 0
      %v615 = vsel %vm388, %v585, 0
      %v618 = vsel %vm388, %v586, 0
      %v621 = vsel %vm388, %v587, 0
      %v624 = vsel %vm388, %v588, 0
      %v627 = vsel %vm388, %v589, 0
      %v630 = vsel %vm388, %v590, 0
      %v633 = vsel %vm388, %v591, 0
      %v636 = vsel %vm388, %v592, 0
      %v639 = vsel %vm388, %v593, 0
      %v642 = vsel %vm388, %v594, 0
      %v645 = vsel %vm388, %v595, 0
      %v648 = vsel %vm388, %v596, 0
      %v651 = vsel %vm388, %v597, 0
      %653 = vmatprep.subr.mxu0 0.0
      %654 = vmatpush1.msra.mxu0 0.0
      %655 = vmatprep.subr.mxu0 0.0
      %656 = vmatpush1.msra.mxu0 0.0
      %657 = vmatprep.subr.mxu0 0.0
      %658 = vmatpush1.msra.mxu0 0.0
      %659 = vmatprep.subr.mxu0 0.0
      %660 = vmatpush1.msra.mxu0 0.0
      %661 = vmatprep.subr.mxu0 0.0
      %662 = vmatpush1.msra.mxu0 0.0
      %663 = vmatprep.subr.mxu0 0.0
      %664 = vmatpush1.msra.mxu0 0.0
      %665 = vmatprep.subr.mxu0 0.0
      %666 = vmatpush1.msra.mxu0 0.0
      %667 = vmatprep.subr.mxu0 0.0
      %668 = vmatpush1.msra.mxu0 0.0
      %669 = vmatprep.subr.mxu0 0.0
      %670 = vmatpush1.msra.mxu0 0.0
      %671 = vmatprep.subr.mxu0 0.0
      %672 = vmatpush1.msra.mxu0 0.0
      %673 = vmatprep.subr.mxu0 0.0
      %674 = vmatpush1.msra.mxu0 0.0
      %675 = vmatprep.subr.mxu0 0.0
      %676 = vmatpush1.msra.mxu0 0.0
      %677 = vmatprep.subr.mxu0 0.0
      %678 = vmatpush1.msra.mxu0 0.0
      %679 = vmatprep.subr.mxu0 0.0
      %680 = vmatpush1.msra.mxu0 0.0
      %681 = vmatprep.subr.mxu0 0.0
      %682 = vmatpush1.msra.mxu0 %v599
      %683 = vmatprep.subr.mxu0 0.0
      %684 = vmatpush1.msra.mxu0 %v598
      %685 = vmatprep.subr.mxu0 0.0
      %686 = vmatpush2.msra.mxu0 0.0
      %687 = vmatprep.subr.mxu0 0.0
      %688 = vmatpush2.msra.mxu0 0.0
      %689 = vmatprep.subr.mxu0 0.0
      %690 = vmatpush2.msra.mxu0 0.0
      %691 = vmatprep.subr.mxu0 0.0
      %692 = vmatpush2.msra.mxu0 0.0
      %693 = vmatprep.subr.mxu0 0.0
      %694 = vmatpush2.msra.mxu0 0.0
      %695 = vmatprep.subr.mxu0 0.0
      %696 = vmatpush2.msra.mxu0 0.0
      %697 = vmatprep.subr.mxu0 0.0
      %698 = vmatpush2.msra.mxu0 0.0
      %699 = vmatprep.subr.mxu0 0.0
      %700 = vmatpush2.msra.mxu0 0.0
      %701 = vmatprep.subr.mxu0 0.0
      %702 = vmatpush2.msra.mxu0 0.0
      %703 = vmatprep.subr.mxu0 0.0
      %704 = vmatpush2.msra.mxu0 0.0
      %705 = vmatprep.subr.mxu0 0.0
      %706 = vmatpush2.msra.mxu0 0.0
      %707 = vmatprep.subr.mxu0 0.0
      %708 = vmatpush2.msra.mxu0 0.0
      %709 = vmatprep.subr.mxu0 0.0
      %710 = vmatpush2.msra.mxu0 0.0
      %711 = vmatprep.subr.mxu0 0.0
      %712 = vmatpush2.msra.mxu0 0.0
      %713 = vmatprep.subr.mxu0 0.0
      %714 = vmatpush2.msra.mxu0 0.0
      %715 = vmatprep.subr.mxu0 0.0
      %716 = vmatpush2.msra.mxu0 0.0
      %717 = vmatprep.mubr.f32.mxu0 0.0
      %718 = vmatmul.mubr.f32.gmra.mxu0 %v606
      %v719 = vpop.f32.mrf.mxu0
      %v720 = vadd.f32 %v604, %v719
      %v721 = vpop.f32.mrf.mxu0
      %722 = vmatprep.mubr.f32.mxu0 0.0
      %723 = vmatmul.mubr.f32.gmra.mxu0 %v609
      %v724 = vpop.f32.mrf.mxu0
      %v725 = vadd.f32 %v604, %v724
      %v726 = vpop.f32.mrf.mxu0
      %727 = vmatprep.mubr.f32.mxu0 0.0
      %728 = vmatmul.mubr.f32.gmra.mxu0 %v612
      %v729 = vpop.f32.mrf.mxu0
      %v730 = vadd.f32 %v604, %v729
      %v731 = vpop.f32.mrf.mxu0
      %732 = vmatprep.mubr.f32.mxu0 0.0
      %733 = vmatmul.mubr.f32.gmra.mxu0 %v615
      %v734 = vpop.f32.mrf.mxu0
      %v735 = vadd.f32 %v604, %v734
      %v736 = vpop.f32.mrf.mxu0
      %737 = vmatprep.mubr.f32.mxu0 0.0
      %738 = vmatmul.mubr.f32.gmra.mxu0 %v618
      %v739 = vpop.f32.mrf.mxu0
      %v740 = vadd.f32 %v604, %v739
      %v741 = vpop.f32.mrf.mxu0
      %742 = vmatprep.mubr.f32.mxu0 0.0
      %743 = vmatmul.mubr.f32.gmra.mxu0 %v621
      %v744 = vpop.f32.mrf.mxu0
      %v745 = vadd.f32 %v604, %v744
      %v746 = vpop.f32.mrf.mxu0
      %747 = vmatprep.mubr.f32.mxu0 0.0
      %748 = vmatmul.mubr.f32.gmra.mxu0 %v624
      %v749 = vpop.f32.mrf.mxu0
      %v750 = vadd.f32 %v604, %v749
      %v751 = vpop.f32.mrf.mxu0
      %752 = vmatprep.mubr.f32.mxu0 0.0
      %753 = vmatmul.mubr.f32.gmra.mxu0 %v627
      %v754 = vpop.f32.mrf.mxu0
      %v755 = vadd.f32 %v604, %v754
      %v756 = vpop.f32.mrf.mxu0
      %757 = vmatprep.mubr.f32.mxu0 0.0
      %758 = vmatmul.mubr.f32.gmra.mxu0 %v630
      %v759 = vpop.f32.mrf.mxu0
      %v760 = vadd.f32 %v604, %v759
      %v761 = vpop.f32.mrf.mxu0
      %762 = vmatprep.mubr.f32.mxu0 0.0
      %763 = vmatmul.mubr.f32.gmra.mxu0 %v633
      %v764 = vpop.f32.mrf.mxu0
      %v765 = vadd.f32 %v604, %v764
      %v766 = vpop.f32.mrf.mxu0
      %767 = vmatprep.mubr.f32.mxu0 0.0
      %768 = vmatmul.mubr.f32.gmra.mxu0 %v636
      %v769 = vpop.f32.mrf.mxu0
      %v770 = vadd.f32 %v604, %v769
      %v771 = vpop.f32.mrf.mxu0
      %772 = vmatprep.mubr.f32.mxu0 0.0
      %773 = vmatmul.mubr.f32.gmra.mxu0 %v639
      %v774 = vpop.f32.mrf.mxu0
      %v775 = vadd.f32 %v604, %v774
      %v776 = vpop.f32.mrf.mxu0
      %777 = vmatprep.mubr.f32.mxu0 0.0
      %778 = vmatmul.mubr.f32.gmra.mxu0 %v642
      %v779 = vpop.f32.mrf.mxu0
      %v780 = vadd.f32 %v604, %v779
      %v781 = vpop.f32.mrf.mxu0
      %782 = vmatprep.mubr.f32.mxu0 0.0
      %783 = vmatmul.mubr.f32.gmra.mxu0 %v645
      %v784 = vpop.f32.mrf.mxu0
      %v785 = vadd.f32 %v604, %v784
      %v786 = vpop.f32.mrf.mxu0
      %787 = vmatprep.mubr.f32.mxu0 0.0
      %788 = vmatmul.mubr.f32.gmra.mxu0 %v648
      %v789 = vpop.f32.mrf.mxu0
      %v790 = vadd.f32 %v604, %v789
      %v791 = vpop.f32.mrf.mxu0
      %792 = vmatprep.mubr.f32.mxu0 0.0
      %793 = vmatmul.mubr.f32.gmra.mxu0 %v651
      %v794 = vpop.f32.mrf.mxu0
      %v795 = vadd.f32 %v604, %v794
      %v796 = vpop.f32.mrf.mxu0
      %797 = vdwg.mxu0
      %814 = vrot.lane.b32.xlu0 %v720, 1
      %v815 = vpop.permute.xlu0 %814
      %816 = vrot.lane.b32.xlu0 %v725, 1
      %v817 = vpop.permute.xlu0 %816
      %818 = vrot.lane.b32.xlu0 %v730, 1
      %v819 = vpop.permute.xlu0 %818
      %820 = vrot.lane.b32.xlu0 %v735, 1
      %v821 = vpop.permute.xlu0 %820
      %822 = vrot.lane.b32.xlu0 %v740, 1
      %v823 = vpop.permute.xlu0 %822
      %824 = vrot.lane.b32.xlu0 %v745, 1
      %v825 = vpop.permute.xlu0 %824
      %826 = vrot.lane.b32.xlu0 %v750, 1
      %v827 = vpop.permute.xlu0 %826
      %828 = vrot.lane.b32.xlu0 %v755, 1
      %v829 = vpop.permute.xlu0 %828
      %830 = vrot.lane.b32.xlu0 %v760, 1
      %v831 = vpop.permute.xlu0 %830
      %832 = vrot.lane.b32.xlu0 %v765, 1
      %v833 = vpop.permute.xlu0 %832
      %834 = vrot.lane.b32.xlu0 %v770, 1
      %v835 = vpop.permute.xlu0 %834
      %836 = vrot.lane.b32.xlu0 %v775, 1
      %v837 = vpop.permute.xlu0 %836
      %838 = vrot.lane.b32.xlu0 %v780, 1
      %v839 = vpop.permute.xlu0 %838
      %840 = vrot.lane.b32.xlu0 %v785, 1
      %v841 = vpop.permute.xlu0 %840
      %842 = vrot.lane.b32.xlu0 %v790, 1
      %v843 = vpop.permute.xlu0 %842
      %844 = vrot.lane.b32.xlu0 %v795, 1
      %v845 = vpop.permute.xlu0 %844
      %v862 = vsub.f32 %v720, %v815
      %v863 = vsub.f32 %v725, %v817
      %v864 = vsub.f32 %v730, %v819
      %v865 = vsub.f32 %v735, %v821
      %v866 = vsub.f32 %v740, %v823
      %v867 = vsub.f32 %v745, %v825
      %v868 = vsub.f32 %v750, %v827
      %v869 = vsub.f32 %v755, %v829
      %v870 = vsub.f32 %v760, %v831
      %v871 = vsub.f32 %v765, %v833
      %v872 = vsub.f32 %v770, %v835
      %v873 = vsub.f32 %v775, %v837
      %v874 = vsub.f32 %v780, %v839
      %v875 = vsub.f32 %v785, %v841
      %v876 = vsub.f32 %v790, %v843
      %v877 = vsub.f32 %v795, %v845
      %v878 = vmul.f32 %v862, 1.442695
      %v879 = vpow.pop %v878
      %v880 = vmul.f32 %v863, 1.442695
      %v881 = vpow.pop %v880
      %v882 = vmul.f32 %v864, 1.442695
      %v883 = vpow.pop %v882
      %v884 = vmul.f32 %v865, 1.442695
      %v885 = vpow.pop %v884
      %v886 = vmul.f32 %v866, 1.442695
      %v887 = vpow.pop %v886
      %v888 = vmul.f32 %v867, 1.442695
      %v889 = vpow.pop %v888
      %v890 = vmul.f32 %v868, 1.442695
      %v891 = vpow.pop %v890
      %v892 = vmul.f32 %v869, 1.442695
      %v893 = vpow.pop %v892
      %v894 = vmul.f32 %v870, 1.442695
      %v895 = vpow.pop %v894
      %v896 = vmul.f32 %v871, 1.442695
      %v897 = vpow.pop %v896
      %v898 = vmul.f32 %v872, 1.442695
      %v899 = vpow.pop %v898
      %v900 = vmul.f32 %v873, 1.442695
      %v901 = vpow.pop %v900
      %v902 = vmul.f32 %v874, 1.442695
      %v903 = vpow.pop %v902
      %v904 = vmul.f32 %v875, 1.442695
      %v905 = vpow.pop %v904
      %v906 = vmul.f32 %v876, 1.442695
      %v907 = vpow.pop %v906
      %v908 = vmul.f32 %v877, 1.442695
      %v909 = vpow.pop %v908
      %v910 = vadd.f32 %v879, 1.0
      %v911 = vadd.f32 %v881, 1.0
      %v912 = vadd.f32 %v883, 1.0
      %v913 = vadd.f32 %v885, 1.0
      %v914 = vadd.f32 %v887, 1.0
      %v915 = vadd.f32 %v889, 1.0
      %v916 = vadd.f32 %v891, 1.0
      %v917 = vadd.f32 %v893, 1.0
      %v918 = vadd.f32 %v895, 1.0
      %v919 = vadd.f32 %v897, 1.0
      %v920 = vadd.f32 %v899, 1.0
      %v921 = vadd.f32 %v901, 1.0
      %v922 = vadd.f32 %v903, 1.0
      %v923 = vadd.f32 %v905, 1.0
      %v924 = vadd.f32 %v907, 1.0
      %v925 = vadd.f32 %v909, 1.0
      %v926 = vrcp.pop %v910
      %v927 = vmul.f32 1.0, %v926
      %v928 = vrcp.pop %v911
      %v929 = vmul.f32 1.0, %v928
      %v930 = vrcp.pop %v912
      %v931 = vmul.f32 1.0, %v930
      %v932 = vrcp.pop %v913
      %v933 = vmul.f32 1.0, %v932
      %v934 = vrcp.pop %v914
      %v935 = vmul.f32 1.0, %v934
      %v936 = vrcp.pop %v915
      %v937 = vmul.f32 1.0, %v936
      %v938 = vrcp.pop %v916
      %v939 = vmul.f32 1.0, %v938
      %v940 = vrcp.pop %v917
      %v941 = vmul.f32 1.0, %v940
      %v942 = vrcp.pop %v918
      %v943 = vmul.f32 1.0, %v942
      %v944 = vrcp.pop %v919
      %v945 = vmul.f32 1.0, %v944
      %v946 = vrcp.pop %v920
      %v947 = vmul.f32 1.0, %v946
      %v948 = vrcp.pop %v921
      %v949 = vmul.f32 1.0, %v948
      %v950 = vrcp.pop %v922
      %v951 = vmul.f32 1.0, %v950
      %v952 = vrcp.pop %v923
      %v953 = vmul.f32 1.0, %v952
      %v954 = vrcp.pop %v924
      %v955 = vmul.f32 1.0, %v954
      %v956 = vrcp.pop %v925
      %v957 = vmul.f32 1.0, %v956
      %v958 = vlaneseq
      %v959 = vand.u32 %v958, 127
      %vm960 = vcmp.eq.s32.totalorder %v959, 0
      %v961 = vsub.f32 1.0, %v927
      %v962 = vsub.f32 1.0, %v929
      %v963 = vsub.f32 1.0, %v931
      %v964 = vsub.f32 1.0, %v933
      %v965 = vsub.f32 1.0, %v935
      %v966 = vsub.f32 1.0, %v937
      %v967 = vsub.f32 1.0, %v939
      %v968 = vsub.f32 1.0, %v941
      %v969 = vsub.f32 1.0, %v943
      %v970 = vsub.f32 1.0, %v945
      %v971 = vsub.f32 1.0, %v947
      %v972 = vsub.f32 1.0, %v949
      %v973 = vsub.f32 1.0, %v951
      %v974 = vsub.f32 1.0, %v953
      %v975 = vsub.f32 1.0, %v955
      %v976 = vsub.f32 1.0, %v957
      %978 = vset.pattern.permute.xlu0 1
      %979 = vperm.xlu0 %978, %v927
      %v980 = vpop.permute.xlu0 %979
      %983 = vset.pattern.permute.xlu0 1
      %984 = vperm.xlu0 %983, %v929
      %v985 = vpop.permute.xlu0 %984
      %988 = vset.pattern.permute.xlu0 1
      %989 = vperm.xlu0 %988, %v931
      %v990 = vpop.permute.xlu0 %989
      %993 = vset.pattern.permute.xlu0 1
      %994 = vperm.xlu0 %993, %v933
      %v995 = vpop.permute.xlu0 %994
      %998 = vset.pattern.permute.xlu0 1
      %999 = vperm.xlu0 %998, %v935
      %v1000 = vpop.permute.xlu0 %999
      %1003 = vset.pattern.permute.xlu0 1
      %1004 = vperm.xlu0 %1003, %v937
      %v1005 = vpop.permute.xlu0 %1004
      %1008 = vset.pattern.permute.xlu0 1
      %1009 = vperm.xlu0 %1008, %v939
      %v1010 = vpop.permute.xlu0 %1009
      %1013 = vset.pattern.permute.xlu0 1
      %1014 = vperm.xlu0 %1013, %v941
      %v1015 = vpop.permute.xlu0 %1014
      %1018 = vset.pattern.permute.xlu0 1
      %1019 = vperm.xlu0 %1018, %v943
      %v1020 = vpop.permute.xlu0 %1019
      %1023 = vset.pattern.permute.xlu0 1
      %1024 = vperm.xlu0 %1023, %v945
      %v1025 = vpop.permute.xlu0 %1024
      %1028 = vset.pattern.permute.xlu0 1
      %1029 = vperm.xlu0 %1028, %v947
      %v1030 = vpop.permute.xlu0 %1029
      %1033 = vset.pattern.permute.xlu0 1
      %1034 = vperm.xlu0 %1033, %v949
      %v1035 = vpop.permute.xlu0 %1034
      %1038 = vset.pattern.permute.xlu0 1
      %1039 = vperm.xlu0 %1038, %v951
      %v1040 = vpop.permute.xlu0 %1039
      %1043 = vset.pattern.permute.xlu0 1
      %1044 = vperm.xlu0 %1043, %v953
      %v1045 = vpop.permute.xlu0 %1044
      %1048 = vset.pattern.permute.xlu0 1
      %1049 = vperm.xlu0 %1048, %v955
      %v1050 = vpop.permute.xlu0 %1049
      %1053 = vset.pattern.permute.xlu0 1
      %1054 = vperm.xlu0 %1053, %v957
      %v1055 = vpop.permute.xlu0 %1054
      %1058 = vset.pattern.permute.xlu0 1
      %1059 = vperm.xlu0 %1058, %v961
      %v1060 = vpop.permute.xlu0 %1059
      %1063 = vset.pattern.permute.xlu0 1
      %1064 = vperm.xlu0 %1063, %v962
      %v1065 = vpop.permute.xlu0 %1064
      %1068 = vset.pattern.permute.xlu0 1
      %1069 = vperm.xlu0 %1068, %v963
      %v1070 = vpop.permute.xlu0 %1069
      %1073 = vset.pattern.permute.xlu0 1
      %1074 = vperm.xlu0 %1073, %v964
      %v1075 = vpop.permute.xlu0 %1074
      %1078 = vset.pattern.permute.xlu0 1
      %1079 = vperm.xlu0 %1078, %v965
      %v1080 = vpop.permute.xlu0 %1079
      %1083 = vset.pattern.permute.xlu0 1
      %1084 = vperm.xlu0 %1083, %v966
      %v1085 = vpop.permute.xlu0 %1084
      %1088 = vset.pattern.permute.xlu0 1
      %1089 = vperm.xlu0 %1088, %v967
      %v1090 = vpop.permute.xlu0 %1089
      %1093 = vset.pattern.permute.xlu0 1
      %1094 = vperm.xlu0 %1093, %v968
      %v1095 = vpop.permute.xlu0 %1094
      %1098 = vset.pattern.permute.xlu0 1
      %1099 = vperm.xlu0 %1098, %v969
      %v1100 = vpop.permute.xlu0 %1099
      %1103 = vset.pattern.permute.xlu0 1
      %1104 = vperm.xlu0 %1103, %v970
      %v1105 = vpop.permute.xlu0 %1104
      %1108 = vset.pattern.permute.xlu0 1
      %1109 = vperm.xlu0 %1108, %v971
      %v1110 = vpop.permute.xlu0 %1109
      %1113 = vset.pattern.permute.xlu0 1
      %1114 = vperm.xlu0 %1113, %v972
      %v1115 = vpop.permute.xlu0 %1114
      %1118 = vset.pattern.permute.xlu0 1
      %1119 = vperm.xlu0 %1118, %v973
      %v1120 = vpop.permute.xlu0 %1119
      %1123 = vset.pattern.permute.xlu0 1
      %1124 = vperm.xlu0 %1123, %v974
      %v1125 = vpop.permute.xlu0 %1124
      %1128 = vset.pattern.permute.xlu0 1
      %1129 = vperm.xlu0 %1128, %v975
      %v1130 = vpop.permute.xlu0 %1129
      %1133 = vset.pattern.permute.xlu0 1
      %1134 = vperm.xlu0 %1133, %v976
      %v1135 = vpop.permute.xlu0 %1134
      %v1137 = vsel %vm960, %v980, %v1060
      %v1138 = vsel %vm960, %v985, %v1065
      %v1139 = vsel %vm960, %v990, %v1070
      %v1140 = vsel %vm960, %v995, %v1075
      %v1141 = vsel %vm960, %v1000, %v1080
      %v1142 = vsel %vm960, %v1005, %v1085
      %v1143 = vsel %vm960, %v1010, %v1090
      %v1144 = vsel %vm960, %v1015, %v1095
      %v1145 = vsel %vm960, %v1020, %v1100
      %v1146 = vsel %vm960, %v1025, %v1105
      %v1147 = vsel %vm960, %v1030, %v1110
      %v1148 = vsel %vm960, %v1035, %v1115
      %v1149 = vsel %vm960, %v1040, %v1120
      %v1150 = vsel %vm960, %v1045, %v1125
      %v1151 = vsel %vm960, %v1050, %v1130
      %v1152 = vsel %vm960, %v1055, %v1135
      %vm1153 = vcmask 15360
      %1154 = vst.msk [vmem:[%s145] sm:$0xff] %vm1153, %v1137
      %1155 = vst.msk [vmem:[%s145 + $0x8] sm:$0xff] %vm1153, %v1138
      %1156 = vst.msk [vmem:[%s145 + $0x10] sm:$0xff] %vm1153, %v1139
      %1157 = vst.msk [vmem:[%s145 + $0x18] sm:$0xff] %vm1153, %v1140
      %1158 = vst.msk [vmem:[%s145 + $0x20] sm:$0xff] %vm1153, %v1141
      %1159 = vst.msk [vmem:[%s145 + $0x28] sm:$0xff] %vm1153, %v1142
      %1160 = vst.msk [vmem:[%s145 + $0x30] sm:$0xff] %vm1153, %v1143
      %1161 = vst.msk [vmem:[%s145 + $0x38] sm:$0xff] %vm1153, %v1144
      %1162 = vst.msk [vmem:[%s145 + $0x40] sm:$0xff] %vm1153, %v1145
      %1163 = vst.msk [vmem:[%s145 + $0x48] sm:$0xff] %vm1153, %v1146
      %1164 = vst.msk [vmem:[%s145 + $0x50] sm:$0xff] %vm1153, %v1147
      %1165 = vst.msk [vmem:[%s145 + $0x58] sm:$0xff] %vm1153, %v1148
      %1166 = vst.msk [vmem:[%s145 + $0x60] sm:$0xff] %vm1153, %v1149
      %1167 = vst.msk [vmem:[%s145 + $0x68] sm:$0xff] %vm1153, %v1150
      %1168 = vst.msk [vmem:[%s145 + $0x70] sm:$0xff] %vm1153, %v1151
      %1169 = vst.msk [vmem:[%s145 + $0x78] sm:$0xff] %vm1153, %v1152
      %s1170 = smul.u32 16, %s13
      %p1171 = scmp.lt.s32.totalorder %s1170, 63
      %s1172 = scalar_select %p1171, %s1170, 63
      %s1173 = smul.addr %s1172, 8
      %s1174 = scalar_lea.vmem %s2, %s1173
      // Predicated region
      $region29: #{tpu_custom_call.1} parent=27 // pred_check
        %p1175 = pneg %p78
      $region30: #{tpu_custom_call.1} parent=27 // pred_check_branch
        %1177 = sbr.rel (%p1175) target = $region32
      $region31: #{tpu_custom_call.1} parent=27 // pred_region
        %s1178 = smul.u32 16, %s13
      $region32: #{tpu_custom_call.1} parent=27 // pred_fallthru
        _
    $region28: #{tpu_custom_call.1} parent=5 // pred_fallthru
      _
    %p1179 = scmp.le.s32.totalorder 2, %s8
    // Predicated region
    $region33: #{tpu_custom_call.1} parent=5 // pred_check
      %p1180 = pneg %p1179
    $region34: #{tpu_custom_call.1} parent=5 // pred_check_branch
      %1182 = sbr.rel (%p1180) target = $region36
    $region35: #{tpu_custom_call.1} parent=5 // pred_region
      %s1183 = ssub.s32 %s8, 2
      // Predicated region
      $region37: #{tpu_custom_call.1} parent=35 // pred_check
        %p1184 = pneg %p84
      $region38: #{tpu_custom_call.1} parent=35 // pred_check_branch
        %1186 = sbr.rel (%p1184) target = $region40
      $region39: #{tpu_custom_call.1} parent=35 // pred_region
        %s1187 = smul.u32 16, %s14
        %p1188 = scmp.lt.s32.totalorder %s1187, 63
        %s1189 = scalar_select %p1188, %s1187, 63
        %s1190 = smul.addr %s1189, 8
        %s1191 = scalar_lea.vmem %s2, %s1190
      $region40: #{tpu_custom_call.1} parent=35 // pred_fallthru
        _
    $region36: #{tpu_custom_call.1} parent=5 // pred_fallthru
      _
  $region6: #{tpu_custom_call.1} parent=0 // loop_footer
    %s12 = sadd.s32 1, %s8
  $region7: #{tpu_custom_call.1} parent=0 // loop_footer_branch
    %7 = sbr.rel target = $region3
  $region8: #{tpu_custom_call.1} parent=0 // loop_exit
    _

</llo_original>
